<compile_context>
chip_gen: v7x
topology: tpu7x:2x2x1
jax: 0.10.0
libtpu: 0.0.40
codegen_flags: <defaults>
</compile_context>

<pallas_src>
import math

import jax
import jax.numpy as jnp
from jax import lax
from jax.experimental import pallas as pl
from jax.experimental.pallas import tpu as pltpu

_TM_CAP = 256   # rows (flattened batch) per grid step — sized for v7x VMEM
_EPS = 1e-5     # LayerNorm epsilon (matches the PyTorch default in the spec)


def _mlp_gate_kernel(x_ref, w_ref, b_ref, g_ref, beta_ref, o_ref, acc_ref):
    # x_ref: (tm, tk)  w_ref: (O, tk)  b/g/beta: (1, O)
    # o_ref: (tm, O)   acc_ref: (tm, O) f32 scratch
    k = pl.program_id(1)

    @pl.when(k == 0)
    def _():
        acc_ref[...] = jnp.zeros_like(acc_ref)

    # Partial matmul over this K slab: contract the tk axis of x with the tk
    # axis of W (i.e. x @ W.T), accumulating in f32 on the MXU.
    acc_ref[...] += lax.dot_general(
        x_ref[...], w_ref[...],
        dimension_numbers=(((1,), (1,)), ((), ())),
        preferred_element_type=jnp.float32)

    @pl.when(k == pl.num_programs(1) - 1)
    def _():
        h = acc_ref[...] + b_ref[...]
        # One-pass LayerNorm stats over the feature (lane) axis.
        u = jnp.mean(h, axis=-1, keepdims=True)
        s = jnp.maximum(jnp.mean(h * h, axis=-1, keepdims=True) - u * u, 0.0)
        hn = (h - u) * lax.rsqrt(s + _EPS)
        y = g_ref[...] * hn + beta_ref[...]
        o_ref[...] = jax.nn.sigmoid(y).astype(o_ref.dtype)


def _round_up(n, m):
    return ((n + m - 1) // m) * m


def _pick_tk(hidden):
    # The K tile must evenly divide H (a ragged K slab would let padding
    # garbage corrupt the accumulation).  Prefer multiples of 256 so the
    # 256x256 MXUs (v6e/v7x) stay full.
    for tk in (512, 256, 128):
        if hidden % tk == 0:
            return tk
    return hidden


def mlp_gate(hidden_states, weight, bias, ln_weight, ln_bias, *, tm_cap=_TM_CAP):
    """hidden_states: (..., H); weight: (O, H); bias/ln_weight/ln_bias: (O,)."""
    *lead, H = hidden_states.shape
    O, H_w = weight.shape
    assert H == H_w, (H, H_w)
    M = math.prod(lead) if lead else 1

    x2d = hidden_states.reshape(M, H)          # row-major reshape: free

    tk = _pick_tk(H)
    tm = min(tm_cap, _round_up(M, 8))
    # Keep at least two row blocks when possible so the grid has work to
    # shard across cores / keep the pipeline busy.
    while tm > 8 and pl.cdiv(M, tm) < 2:
        tm = max(8, _round_up(tm // 2, 8))

    # Tiny O-length params go to f32; x and W keep their native dtype so the
    # MXU runs at its native (bf16) rate and HBM traffic stays minimal.
    b2 = bias.reshape(1, O).astype(jnp.float32)
    g2 = ln_weight.reshape(1, O).astype(jnp.float32)
    be2 = ln_bias.reshape(1, O).astype(jnp.float32)

    out_dtype = hidden_states.dtype
    # VMEM budget from actual block footprints (double-buffered streamed
    # operands + resident accumulator), with 2x headroom.
    needed = (2 * tm * tk * x2d.dtype.itemsize               # x blocks
              + 2 * O * tk * weight.dtype.itemsize           # W blocks
              + 2 * tm * O * jnp.dtype(out_dtype).itemsize   # out blocks
              + tm * O * 4                                   # f32 accumulator
              + 3 * 2 * O * 4)                               # bias/gamma/beta
    vmem_limit = int(min(max(2 * needed, 32 * 2**20), 64 * 2**20))

    grid = (pl.cdiv(M, tm), H // tk)

    out = pl.pallas_call(
        _mlp_gate_kernel,
        out_shape=jax.ShapeDtypeStruct((M, O), out_dtype),
        grid=grid,
        in_specs=[
            pl.BlockSpec((tm, tk), lambda i, k: (i, k)),   # activations
            pl.BlockSpec((O, tk), lambda i, k: (0, k)),    # weight, native (O, H)
            pl.BlockSpec((1, O), lambda i, k: (0, 0)),     # linear bias
            pl.BlockSpec((1, O), lambda i, k: (0, 0)),     # LN gamma
            pl.BlockSpec((1, O), lambda i, k: (0, 0)),     # LN beta
        ],
        out_specs=pl.BlockSpec((tm, O), lambda i, k: (i, 0)),
        scratch_shapes=[pltpu.VMEM((tm, O), jnp.float32)],
        compiler_params=pltpu.CompilerParams(
            dimension_semantics=("parallel", "arbitrary"),
            vmem_limit_bytes=vmem_limit),
    )(x2d, weight, b2, g2, be2)

    return out.reshape(tuple(lead) + (O,))


def _reference(x, weight, bias, ln_weight, ln_bias, eps=_EPS):
    h = x @ weight.T + bias
    u = h.mean(-1, keepdims=True)
    s = ((h - u) ** 2).mean(-1, keepdims=True)
    hn = (h - u) / jnp.sqrt(s + eps)
    return jax.nn.sigmoid(ln_weight * hn + ln_bias)


if __name__ == "__main__":
    key = jax.random.PRNGKey(0)
    kx, kw, kb = jax.random.split(key, 3)

    # Small, module-consistent shapes: (batch, seq, hidden); out_features = hidden
    B, S, H = 2, 8, 128
    O = H

    x = jax.random.normal(kx, (B, S, H), dtype=jnp.float32)

    # nn.Linear-style uniform init
    bound = 1.0 / math.sqrt(H)
    weight = jax.random.uniform(kw, (O, H), minval=-bound, maxval=bound,
                                dtype=jnp.float32)
    bias = jax.random.uniform(kb, (O,), minval=-bound, maxval=bound,
                              dtype=jnp.float32)
    # LayerNorm params (PyTorch init: ones / zeros)
    ln_w = jnp.ones((O,), jnp.float32)
    ln_b = jnp.zeros((O,), jnp.float32)

    out = mlp_gate(x, weight, bias, ln_w, ln_b)
    jax.block_until_ready(out)

    ref = _reference(x, weight, bias, ln_w, ln_b)
    assert out.shape == (B, S, O), out.shape
    assert jnp.allclose(out, ref, atol=1e-5, rtol=1e-5), float(
        jnp.max(jnp.abs(out - ref)))
    print("KERNEL_OK")
</pallas_src>

<mosaic_0001>
module attributes {stable_mosaic.version = 11 : i64} {
  func.func @_mlp_gate_kernel(%arg0: i32, %arg1: i32, %arg2: memref<8x128xf32, #tpu.memory_space<vmem>>, %arg3: memref<128x128xf32, #tpu.memory_space<vmem>>, %arg4: memref<1x128xf32, #tpu.memory_space<vmem>>, %arg5: memref<1x128xf32, #tpu.memory_space<vmem>>, %arg6: memref<1x128xf32, #tpu.memory_space<vmem>>, %arg7: memref<8x128xf32, #tpu.memory_space<vmem>>, %arg8: memref<8x128xf32, #tpu.memory_space<vmem>>) attributes {dimension_semantics = [#tpu.dimension_semantics<parallel>, #tpu.dimension_semantics<arbitrary>], iteration_bounds = array<i64: 2, 1>, scalar_prefetch = 0 : i64, scratch_operands = 1 : i64, tpu.core_type = #tpu.core_type<tc>, window_params = [{transform_indices = @transform_0, window_bounds = array<i64: 8, 128>}, {transform_indices = @transform_1, window_bounds = array<i64: 128, 128>}, {pipeline_mode = #tpu.pipeline_mode<synchronous>, transform_indices = @transform_2, window_bounds = array<i64: 1, 128>}, {pipeline_mode = #tpu.pipeline_mode<synchronous>, transform_indices = @transform_3, window_bounds = array<i64: 1, 128>}, {pipeline_mode = #tpu.pipeline_mode<synchronous>, transform_indices = @transform_4, window_bounds = array<i64: 1, 128>}, {transform_indices = @transform_5, window_bounds = array<i64: 8, 128>}]} {
    %c0_i32 = arith.constant 0 : i32
    %0 = arith.cmpi eq, %arg1, %c0_i32 : i32
    %1 = arith.extui %0 : i1 to i32
    %c0_i32_0 = arith.constant 0 : i32
    %2 = arith.cmpi ne, %1, %c0_i32_0 : i32
    scf.if %2 {
      %cst_10 = arith.constant 0.000000e+00 : f32
      %12 = vector.broadcast %cst_10 : f32 to vector<8x128xf32>
      %c0_11 = arith.constant 0 : index
      %c0_12 = arith.constant 0 : index
      %13 = vector.load %arg8[%c0_11, %c0_12] : memref<8x128xf32, #tpu.memory_space<vmem>>, vector<8x128xf32>
      tpu.vector_store %arg8[%c0_11, %c0_12], %12 {strides = array<i32>} : memref<8x128xf32, #tpu.memory_space<vmem>>, vector<8x128xf32>,
    } else {
    }
    %c0 = arith.constant 0 : index
    %c0_1 = arith.constant 0 : index
    %3 = vector.load %arg8[%c0, %c0_1] : memref<8x128xf32, #tpu.memory_space<vmem>>, vector<8x128xf32>
    %c0_2 = arith.constant 0 : index
    %c0_3 = arith.constant 0 : index
    %4 = vector.load %arg2[%c0_2, %c0_3] : memref<8x128xf32, #tpu.memory_space<vmem>>, vector<8x128xf32>
    %c0_4 = arith.constant 0 : index
    %c0_5 = arith.constant 0 : index
    %5 = vector.load %arg3[%c0_4, %c0_5] : memref<128x128xf32, #tpu.memory_space<vmem>>, vector<128x128xf32>
    %cst = arith.constant dense<0.000000e+00> : vector<8x128xf32>
    %6 = tpu.matmul %4, %5, %cst {dimension_numbers = #tpu.dot_dimension_numbers<[1], [1], [0], [0], [0, 0, 1, 0], [], []>} : vector<8x128xf32>, vector<128x128xf32>, vector<8x128xf32> -> vector<8x128xf32>
    %7 = arith.addf %3, %6 : vector<8x128xf32>
    %c0_6 = arith.constant 0 : index
    %c0_7 = arith.constant 0 : index
    %8 = vector.load %arg8[%c0_6, %c0_7] : memref<8x128xf32, #tpu.memory_space<vmem>>, vector<8x128xf32>
    tpu.vector_store %arg8[%c0_6, %c0_7], %7 {strides = array<i32>} : memref<8x128xf32, #tpu.memory_space<vmem>>, vector<8x128xf32>,
    %c0_i32_8 = arith.constant 0 : i32
    %9 = arith.cmpi eq, %arg1, %c0_i32_8 : i32
    %10 = arith.extui %9 : i1 to i32
    %c0_i32_9 = arith.constant 0 : i32
    %11 = arith.cmpi ne, %10, %c0_i32_9 : i32
    scf.if %11 {
      %c0_10 = arith.constant 0 : index
      %c0_11 = arith.constant 0 : index
      %12 = vector.load %arg8[%c0_10, %c0_11] : memref<8x128xf32, #tpu.memory_space<vmem>>, vector<8x128xf32>
      %c0_12 = arith.constant 0 : index
      %c0_13 = arith.constant 0 : index
      %13 = vector.load %arg4[%c0_12, %c0_13] : memref<1x128xf32, #tpu.memory_space<vmem>>, vector<1x128xf32>
      %14 = vector.broadcast %13 : vector<1x128xf32> to vector<8x128xf32>
      %15 = arith.addf %12, %14 : vector<8x128xf32>
      %cst_14 = arith.constant dense<0.000000e+00> : vector<8xf32>
      %16 = vector.multi_reduction <add>, %15, %cst_14 [1] : vector<8x128xf32> to vector<8xf32>
      %17 = vector.shape_cast %16 : vector<8xf32> to vector<8x1xf32>
      %cst_15 = arith.constant 1.280000e+02 : f32
      %18 = vector.broadcast %cst_15 : f32 to vector<8x1xf32>
      %19 = arith.divf %17, %18 : vector<8x1xf32>
      %20 = arith.mulf %15, %15 : vector<8x128xf32>
      %cst_16 = arith.constant dense<0.000000e+00> : vector<8xf32>
      %21 = vector.multi_reduction <add>, %20, %cst_16 [1] : vector<8x128xf32> to vector<8xf32>
      %22 = vector.shape_cast %21 : vector<8xf32> to vector<8x1xf32>
      %cst_17 = arith.constant 1.280000e+02 : f32
      %23 = vector.broadcast %cst_17 : f32 to vector<8x1xf32>
      %24 = arith.divf %22, %23 : vector<8x1xf32>
      %25 = arith.mulf %19, %19 : vector<8x1xf32>
      %26 = arith.subf %24, %25 : vector<8x1xf32>
      %cst_18 = arith.constant 0.000000e+00 : f32
      %27 = vector.broadcast %cst_18 : f32 to vector<8x1xf32>
      %28 = arith.maximumf %26, %27 : vector<8x1xf32>
      %29 = vector.broadcast %19 : vector<8x1xf32> to vector<8x128xf32>
      %30 = arith.subf %15, %29 : vector<8x128xf32>
      %cst_19 = arith.constant 9.99999974E-6 : f32
      %31 = vector.broadcast %cst_19 : f32 to vector<8x1xf32>
      %32 = arith.addf %28, %31 : vector<8x1xf32>
      %33 = math.rsqrt %32 : vector<8x1xf32>
      %34 = vector.broadcast %33 : vector<8x1xf32> to vector<8x128xf32>
      %35 = arith.mulf %30, %34 : vector<8x128xf32>
      %c0_20 = arith.constant 0 : index
      %c0_21 = arith.constant 0 : index
      %36 = vector.load %arg5[%c0_20, %c0_21] : memref<1x128xf32, #tpu.memory_space<vmem>>, vector<1x128xf32>
      %37 = vector.broadcast %36 : vector<1x128xf32> to vector<8x128xf32>
      %38 = arith.mulf %37, %35 : vector<8x128xf32>
      %c0_22 = arith.constant 0 : index
      %c0_23 = arith.constant 0 : index
      %39 = vector.load %arg6[%c0_22, %c0_23] : memref<1x128xf32, #tpu.memory_space<vmem>>, vector<1x128xf32>
      %40 = vector.broadcast %39 : vector<1x128xf32> to vector<8x128xf32>
      %41 = arith.addf %38, %40 : vector<8x128xf32>
      %42 = arith.negf %41 : vector<8x128xf32>
      %43 = math.exp %42 : vector<8x128xf32>
      %cst_24 = arith.constant 1.000000e+00 : f32
      %44 = vector.broadcast %cst_24 : f32 to vector<8x128xf32>
      %45 = arith.addf %44, %43 : vector<8x128xf32>
      %46 = arith.divf %44, %45 : vector<8x128xf32>
      %c0_25 = arith.constant 0 : index
      %c0_26 = arith.constant 0 : index
      %47 = vector.load %arg7[%c0_25, %c0_26] : memref<8x128xf32, #tpu.memory_space<vmem>>, vector<8x128xf32>
      tpu.vector_store %arg7[%c0_25, %c0_26], %46 {strides = array<i32>} : memref<8x128xf32, #tpu.memory_space<vmem>>, vector<8x128xf32>,
    } else {
    }
    return
  }
  func.func @transform_0(%arg0: i32, %arg1: i32) -> (i32, i32) {
    %c0_i32 = arith.constant 0 : i32
    return %arg0, %arg1 : i32, i32
  }
  func.func @transform_1(%arg0: i32, %arg1: i32) -> (i32, i32) {
    %c0_i32 = arith.constant 0 : i32
    %c0_i32_0 = arith.constant 0 : i32
    return %c0_i32, %arg1 : i32, i32
  }
  func.func @transform_2(%arg0: i32, %arg1: i32) -> (i32, i32) {
    %c0_i32 = arith.constant 0 : i32
    %c0_i32_0 = arith.constant 0 : i32
    %c0_i32_1 = arith.constant 0 : i32
    return %c0_i32, %c0_i32_0 : i32, i32
  }
  func.func @transform_3(%arg0: i32, %arg1: i32) -> (i32, i32) {
    %c0_i32 = arith.constant 0 : i32
    %c0_i32_0 = arith.constant 0 : i32
    %c0_i32_1 = arith.constant 0 : i32
    return %c0_i32, %c0_i32_0 : i32, i32
  }
  func.func @transform_4(%arg0: i32, %arg1: i32) -> (i32, i32) {
    %c0_i32 = arith.constant 0 : i32
    %c0_i32_0 = arith.constant 0 : i32
    %c0_i32_1 = arith.constant 0 : i32
    return %c0_i32, %c0_i32_0 : i32, i32
  }
  func.func @transform_5(%arg0: i32, %arg1: i32) -> (i32, i32) {
    %c0_i32 = arith.constant 0 : i32
    %c0_i32_0 = arith.constant 0 : i32
    return %arg0, %c0_i32 : i32, i32
  }
}

</mosaic_0001>

<llo_original>
// kernel: tpu_custom_call.1
$region0: #{tpu_custom_call.1}
  #allocation0 [shape = 'u32[]', space=smem, size = 0x4, offset = 0x4, fixed_abs, tag = 'smem constant byte address 0x4 - core index']
  #allocation1 [shape = 'u32[144,128]{1,0:T(1,128)}', space=vmem, size = 0x12000, scoped, tag = 'internal scratch']
  #allocation2 [shape = 'f32[8,128]{1,0:T(8,128)}', space=vmem, size = 0x1000, scoped, tag = 'scratch operand']
  %s0 = inlined_call_operand.hbm [shape: f32[16,128], index: 0, kind: input, shape index: {}]
  %s1 = inlined_call_operand.hbm [shape: f32[128,128], index: 1, kind: input, shape index: {}]
  %s2 = inlined_call_operand.vmem [shape: f32[1,128], index: 2, kind: input, shape index: {}]
  %s3 = inlined_call_operand.vmem [shape: f32[1,128], index: 3, kind: input, shape index: {}]
  %s4 = inlined_call_operand.vmem [shape: f32[1,128], index: 4, kind: input, shape index: {}]
  %s5 = inlined_call_operand.hbm [shape: f32[16,128], index: 5, kind: output, shape index: {}]
  %s6 = sld [smem:[#allocation0]]
  $region69: #{tpu_custom_call.1} parent=0
    _
  %s8 = ssub.s32 1, %s6
  %s9 = scalar_select 0, %s8, %s6
  $region1: #{tpu_custom_call.1} parent=0
    #allocation3 [shape = 'u8[8192]{0}', space=vmem, size = 0x2000, scoped, tag = 'input window, operand 0']
    #allocation4 [shape = 's32[2]{0}', space=sflag, size = 0x8, scoped, tag = 'scoped memory for tpu_custom_call.1']
    #allocation5 [shape = 's32[2]{0}', space=sflag, size = 0x8, scoped, tag = 'scoped memory for tpu_custom_call.1']
    #allocation6 [shape = 'u8[65536]{0}', space=vmem, size = 0x10000, scoped, tag = 'input window, operand 1, single buffered']
    #allocation7 [shape = 's32[1]{0}', space=sflag, size = 0x4, scoped, tag = 'scoped memory for tpu_custom_call.1']
    #allocation8 [shape = 'u8[8192]{0}', space=vmem, size = 0x2000, scoped, tag = 'output window, operand 0']
    %10 = vsyncpa [#allocation4], 0
    %s11 = scalar_lea.sflag [#allocation4], 1
    %12 = vsyncpa %s11, 0
    %13 = vsyncpa [#allocation7], 0
    %14 = vsyncpa [#allocation5], 0
    %s15 = scalar_lea.sflag [#allocation5], 1
    %16 = vsyncpa %s15, 0
    loop: start=0, step=1, limit=4
    $region2: #{tpu_custom_call.1} parent=1 // loop_pre_header
      _
    $region3: #{tpu_custom_call.1} parent=1 // loop_header
      %s18 = sphi 0, %s22
      %p19 = scmp.ge.s32.totalorder %s18, 4
      %s25 = sphi 0, %s37
      %s26 = sphi 0, %s33
      %s27 = sphi 0, %s25
      %s28 = sphi 0, %s26
      %s29 = sphi 0, %s27
      %s30 = sphi 0, %s28
      %s42 = sphi 0, %s44
      %s45 = sphi 0, %s42
      %s46 = sphi 0, %s45
      %s62 = sphi 0, %s46
      %s68 = sphi 0, %s70
      %s71 = sphi 0, %s68
      %s72 = sphi 0, %s71
      %s88 = sphi 0, %s72
      %s92 = sphi 0, %s92
      %s94 = sphi 0, %s92
      %s95 = sphi 0, %s94
      %s109 = sphi 0, %s95
      %s113 = sphi 0, %s113
      %s115 = sphi 0, %s113
      %s116 = sphi 0, %s115
      %s130 = sphi 0, %s116
      %s134 = sphi 0, %s134
      %s136 = sphi 0, %s134
      %s137 = sphi 0, %s136
      %s151 = sphi 0, %s137
      %s157 = sphi 0, %s159
      %s160 = sphi 0, %s157
      %s161 = sphi 0, %s160
      %s177 = sphi 0, %s161
    $region4: #{tpu_custom_call.1} parent=1 // loop_header_branch
      %21 = sbr.rel (%p19) target = $region8
    $region5: #{tpu_custom_call.1} parent=1 // loop_body
      %s23 = ssub.s32 %s18, 1
      %s24 = ssub.s32 %s18, 2
      %s31 = sadd.s32 1, %s26
      %p32 = scmp.ge.s32.totalorder %s31, 1
      %s33 = scalar_select %p32, 0, %s31
      %s34 = sadd.s32 1, %s25
      %s35 = scalar_select %p32, %s34, %s25
      %p36 = scmp.ge.s32.totalorder %s35, 2
      %s37 = scalar_select %p36, 0, %s35
      %s38 = ssub.s32 %s25, %s37
      %s39 = ssub.s32 %s26, %s33
      %s40 = sor.u32 %s38, %s39
      %p41 = scmp.eq.s32.totalorder %s40, 0
      %s43 = sadd.s32 %s42, 1
      %s44 = scalar_select %p41, %s42, %s43
      %p47 = pneg %p41
      %p48 = scmp.eq.s32.totalorder %s18, 1
      %p49 = por %p47, %p48
      %p50 = scmp.ne.s32.totalorder %s42, %s45
      %p51 = scmp.eq.s32.totalorder %s18, 0
      %p52 = por %p50, %p51
      %p53 = scmp.ne.s32.totalorder %s42, %s45
      %p54 = scmp.eq.s32.totalorder %s23, 1
      %p55 = por %p53, %p54
      %p56 = scmp.ne.s32.totalorder %s45, %s46
      %p57 = scmp.eq.s32.totalorder %s23, 0
      %p58 = por %p56, %p57
      %p59 = scmp.ne.s32.totalorder %s45, %s46
      %p60 = scmp.eq.s32.totalorder %s24, 1
      %p61 = por %p59, %p60
      %p63 = scmp.ne.s32.totalorder %s46, %s62
      %p64 = scmp.eq.s32.totalorder %s24, 0
      %p65 = por %p63, %p64
      %s66 = ssub.s32 %s26, %s33
      %p67 = scmp.eq.s32.totalorder %s66, 0
      %s69 = sadd.s32 %s68, 1
      %s70 = scalar_select %p67, %s68, %s69
      %p73 = pneg %p67
      %p74 = scmp.eq.s32.totalorder %s18, 1
      %p75 = por %p73, %p74
      %p76 = scmp.ne.s32.totalorder %s68, %s71
      %p77 = scmp.eq.s32.totalorder %s18, 0
      %p78 = por %p76, %p77
      %p79 = scmp.ne.s32.totalorder %s68, %s71
      %p80 = scmp.eq.s32.totalorder %s23, 1
      %p81 = por %p79, %p80
      %p82 = scmp.ne.s32.totalorder %s71, %s72
      %p83 = scmp.eq.s32.totalorder %s23, 0
      %p84 = por %p82, %p83
      %p85 = scmp.ne.s32.totalorder %s71, %s72
      %p86 = scmp.eq.s32.totalorder %s24, 1
      %p87 = por %p85, %p86
      %p89 = scmp.ne.s32.totalorder %s72, %s88
      %p90 = scmp.eq.s32.totalorder %s24, 0
      %p91 = por %p89, %p90
      %s93 = sadd.s32 %s92, 1
      %p96 = scmp.eq.s32.totalorder %s18, 1
      %p97 = scmp.ne.s32.totalorder %s92, %s94
      %p98 = scmp.eq.s32.totalorder %s18, 0
      %p99 = por %p97, %p98
      %p100 = scmp.ne.s32.totalorder %s92, %s94
      %p101 = scmp.eq.s32.totalorder %s23, 1
      %p102 = por %p100, %p101
      %p103 = scmp.ne.s32.totalorder %s94, %s95
      %p104 = scmp.eq.s32.totalorder %s23, 0
      %p105 = por %p103, %p104
      %p106 = scmp.ne.s32.totalorder %s94, %s95
      %p107 = scmp.eq.s32.totalorder %s24, 1
      %p108 = por %p106, %p107
      %p110 = scmp.ne.s32.totalorder %s95, %s109
      %p111 = scmp.eq.s32.totalorder %s24, 0
      %p112 = por %p110, %p111
      %s114 = sadd.s32 %s113, 1
      %p117 = scmp.eq.s32.totalorder %s18, 1
      %p118 = scmp.ne.s32.totalorder %s113, %s115
      %p119 = scmp.eq.s32.totalorder %s18, 0
      %p120 = por %p118, %p119
      %p121 = scmp.ne.s32.totalorder %s113, %s115
      %p122 = scmp.eq.s32.totalorder %s23, 1
      %p123 = por %p121, %p122
      %p124 = scmp.ne.s32.totalorder %s115, %s116
      %p125 = scmp.eq.s32.totalorder %s23, 0
      %p126 = por %p124, %p125
      %p127 = scmp.ne.s32.totalorder %s115, %s116
      %p128 = scmp.eq.s32.totalorder %s24, 1
      %p129 = por %p127, %p128
      %p131 = scmp.ne.s32.totalorder %s116, %s130
      %p132 = scmp.eq.s32.totalorder %s24, 0
      %p133 = por %p131, %p132
      %s135 = sadd.s32 %s134, 1
      %p138 = scmp.eq.s32.totalorder %s18, 1
      %p139 = scmp.ne.s32.totalorder %s134, %s136
      %p140 = scmp.eq.s32.totalorder %s18, 0
      %p141 = por %p139, %p140
      %p142 = scmp.ne.s32.totalorder %s134, %s136
      %p143 = scmp.eq.s32.totalorder %s23, 1
      %p144 = por %p142, %p143
      %p145 = scmp.ne.s32.totalorder %s136, %s137
      %p146 = scmp.eq.s32.totalorder %s23, 0
      %p147 = por %p145, %p146
      %p148 = scmp.ne.s32.totalorder %s136, %s137
      %p149 = scmp.eq.s32.totalorder %s24, 1
      %p150 = por %p148, %p149
      %p152 = scmp.ne.s32.totalorder %s137, %s151
      %p153 = scmp.eq.s32.totalorder %s24, 0
      %p154 = por %p152, %p153
      %s155 = ssub.s32 %s25, %s37
      %p156 = scmp.eq.s32.totalorder %s155, 0
      %s158 = sadd.s32 %s157, 1
      %s159 = scalar_select %p156, %s157, %s158
      %p162 = pneg %p156
      %p163 = scmp.eq.s32.totalorder %s18, 1
      %p164 = por %p162, %p163
      %p165 = scmp.ne.s32.totalorder %s157, %s160
      %p166 = scmp.eq.s32.totalorder %s18, 0
      %p167 = por %p165, %p166
      %p168 = scmp.ne.s32.totalorder %s157, %s160
      %p169 = scmp.eq.s32.totalorder %s23, 1
      %p170 = por %p168, %p169
      %p171 = scmp.ne.s32.totalorder %s160, %s161
      %p172 = scmp.eq.s32.totalorder %s23, 0
      %p173 = por %p171, %p172
      %p174 = scmp.ne.s32.totalorder %s160, %s161
      %p175 = scmp.eq.s32.totalorder %s24, 1
      %p176 = por %p174, %p175
      %p178 = scmp.ne.s32.totalorder %s161, %s177
      %p179 = scmp.eq.s32.totalorder %s24, 0
      %p180 = por %p178, %p179
      %p181 = scmp.le.s32.totalorder 1, %s18
      %p182 = scmp.lt.s32.totalorder %s18, 3
      %p183 = pnand %p181, %p182
      %p184 = pneg %p183
      // Predicated region
      $region9: #{tpu_custom_call.1} parent=5 // pred_check
        _
      $region10: #{tpu_custom_call.1} parent=5 // pred_check_branch
        %186 = sbr.rel (%p183) target = $region12
      $region11: #{tpu_custom_call.1} parent=5 // pred_region
        %s187 = ssub.s32 %s18, 1
        // Predicated region
        $region13: #{tpu_custom_call.1} parent=11 // pred_check
          %p188 = pneg %p84
        $region14: #{tpu_custom_call.1} parent=11 // pred_check_branch
          %190 = sbr.rel (%p188) target = $region16
        $region15: #{tpu_custom_call.1} parent=11 // pred_region
          %s192 = ssub.s32 2048, 2048
          %193 = vsyncadd [#allocation7], %s192
          %s194 = smul.addr %s28, 128
          %s195 = scalar_lea.hbm %s1, %s194
          %s196 = sshll.u32 [#allocation6], 4
          %s197 = int_to_ptr.vmem [resolvable:$true] %s196
          %202 = dma.hbm_to_vmem [thread:$0]  %s195, 2048, %s197, [#allocation7], 128, 128, 8
        $region16: #{tpu_custom_call.1} parent=11 // pred_fallthru
          _
        // Predicated region
        $region17: #{tpu_custom_call.1} parent=11 // pred_check
          %p203 = pneg %p105
        $region18: #{tpu_custom_call.1} parent=11 // pred_check_branch
          %205 = sbr.rel (%p203) target = $region20
        $region19: #{tpu_custom_call.1} parent=11 // pred_region
          _
        $region20: #{tpu_custom_call.1} parent=11 // pred_fallthru
          _
        // Predicated region
        $region21: #{tpu_custom_call.1} parent=11 // pred_check
          %p206 = pneg %p126
        $region22: #{tpu_custom_call.1} parent=11 // pred_check_branch
          %208 = sbr.rel (%p206) target = $region24
        $region23: #{tpu_custom_call.1} parent=11 // pred_region
          _
        $region24: #{tpu_custom_call.1} parent=11 // pred_fallthru
          _
        // Predicated region
        $region25: #{tpu_custom_call.1} parent=11 // pred_check
          %p209 = pneg %p147
        $region26: #{tpu_custom_call.1} parent=11 // pred_check_branch
          %211 = sbr.rel (%p209) target = $region28
        $region27: #{tpu_custom_call.1} parent=11 // pred_region
          _
        $region28: #{tpu_custom_call.1} parent=11 // pred_fallthru
          _
      $region12: #{tpu_custom_call.1} parent=5 // pred_fallthru
        _
      %p212 = scmp.lt.s32.totalorder %s18, 2
      // Predicated region
      $region29: #{tpu_custom_call.1} parent=5 // pred_check
        %p213 = pneg %p212
      $region30: #{tpu_custom_call.1} parent=5 // pred_check_branch
        %215 = sbr.rel (%p213) target = $region32
      $region31: #{tpu_custom_call.1} parent=5 // pred_region
        // Predicated region
        $region33: #{tpu_custom_call.1} parent=31 // pred_check
          %p216 = pneg %p52
        $region34: #{tpu_custom_call.1} parent=31 // pred_check_branch
          %218 = sbr.rel (%p216) target = $region36
        $region35: #{tpu_custom_call.1} parent=31 // pred_region
          %s219 = sand.u32 %s42, 1
          %s220 = scalar_lea.sflag [#allocation4], %s219
          %s221 = sand.u32 %s42, 1
          %s222 = smul.addr %s221, 8
          %s223 = scalar_lea.vmem [#allocation3], %s222
          %s225 = ssub.s32 128, 128
          %226 = vsyncadd %s220, %s225
          %s227 = sadd.s32 %s26, %s25
          %s228 = smul.addr %s227, 128
          %s229 = scalar_lea.hbm %s0, %s228
          %s231 = sshll.u32 %s223, 4
          %s232 = int_to_ptr.vmem [resolvable:$true] %s231
          %234 = dma.hbm_to_vmem [thread:$0]  %s229, 128, %s232, %s220
        $region36: #{tpu_custom_call.1} parent=31 // pred_fallthru
          _
      $region32: #{tpu_custom_call.1} parent=5 // pred_fallthru
        _
      %p235 = scmp.le.s32.totalorder 1, %s18
      %p236 = scmp.lt.s32.totalorder %s18, 3
      %p237 = pnand %p235, %p236
      %p238 = pneg %p237
      // Predicated region
      $region37: #{tpu_custom_call.1} parent=5 // pred_check
        _
      $region38: #{tpu_custom_call.1} parent=5 // pred_check_branch
        %240 = sbr.rel (%p237) target = $region40
      $region39: #{tpu_custom_call.1} parent=5 // pred_region
        %s241 = ssub.s32 %s18, 1
        %s242 = sand.u32 %s45, 1
        %s243 = scalar_lea.sflag [#allocation4], %s242
        %s244 = sand.u32 %s45, 1
        %s245 = smul.addr %s244, 8
        %s246 = scalar_lea.vmem [#allocation3], %s245
        // Predicated region
        $region41: #{tpu_custom_call.1} parent=39 // pred_check
          %p247 = pneg %p58
        $region42: #{tpu_custom_call.1} parent=39 // pred_check_branch
          %249 = sbr.rel (%p247) target = $region44
        $region43: #{tpu_custom_call.1} parent=39 // pred_region
          %250 = dma.done %s243, 128
        $region44: #{tpu_custom_call.1} parent=39 // pred_fallthru
          _
        // Predicated region
        $region45: #{tpu_custom_call.1} parent=39 // pred_check
          %p251 = pneg %p84
        $region46: #{tpu_custom_call.1} parent=39 // pred_check_branch
          %253 = sbr.rel (%p251) target = $region48
        $region47: #{tpu_custom_call.1} parent=39 // pred_region
          %254 = dma.done [#allocation7], 2048
        $region48: #{tpu_custom_call.1} parent=39 // pred_fallthru
          _
        %s255 = sand.u32 %s45, 1
        %s256 = scalar_lea.sflag [#allocation4], %s255
        %s257 = sand.u32 %s45, 1
        %s258 = smul.addr %s257, 8
        %s259 = scalar_lea.vmem [#allocation3], %s258
        %p260 = pneg %p58
        %p261 = pneg %p55
        %p262 = pneg %p84
        %p263 = pneg %p81
        %p264 = pneg %p105
        %p265 = pneg %p102
        %p266 = pneg %p126
        %p267 = pneg %p123
        %p268 = pneg %p147
        %p269 = pneg %p144
        %p270 = pneg %p173
        %p271 = pneg %p170
        %s272 = sand.u32 %s160, 1
        %s273 = scalar_lea.sflag [#allocation5], %s272
        %s274 = sand.u32 %s160, 1
        %s275 = smul.addr %s274, 8
        %s276 = scalar_lea.vmem [#allocation8], %s275
        %p277 = scmp.eq.s32.totalorder %s28, 0
        // Predicated region
        $region49: #{tpu_custom_call.1} parent=39 // pred_check
          %p278 = pneg %p277
        $region50: #{tpu_custom_call.1} parent=39 // pred_check_branch
          %280 = sbr.rel (%p278) target = $region52
        $region51: #{tpu_custom_call.1} parent=39 // pred_region
          %281 = vst [vmem:[#allocation2] sm:$0xff] 0.0
        $region52: #{tpu_custom_call.1} parent=39 // pred_fallthru
          _
        %v282 = vld [vmem:[#allocation2] sm:$0xff]
        %v283 = vld [vmem:[%s246] sm:$0xff]
        %v284 = vld [vmem:[#allocation6] sm:$0xff]
        %v285 = vld [vmem:[#allocation6 + $0x8] sm:$0xff]
        %v286 = vld [vmem:[#allocation6 + $0x10] sm:$0xff]
        %v287 = vld [vmem:[#allocation6 + $0x18] sm:$0xff]
        %v288 = vld [vmem:[#allocation6 + $0x20] sm:$0xff]
        %v289 = vld [vmem:[#allocation6 + $0x28] sm:$0xff]
        %v290 = vld [vmem:[#allocation6 + $0x30] sm:$0xff]
        %v291 = vld [vmem:[#allocation6 + $0x38] sm:$0xff]
        %v292 = vld [vmem:[#allocation6 + $0x40] sm:$0xff]
        %v293 = vld [vmem:[#allocation6 + $0x48] sm:$0xff]
        %v294 = vld [vmem:[#allocation6 + $0x50] sm:$0xff]
        %v295 = vld [vmem:[#allocation6 + $0x58] sm:$0xff]
        %v296 = vld [vmem:[#allocation6 + $0x60] sm:$0xff]
        %v297 = vld [vmem:[#allocation6 + $0x68] sm:$0xff]
        %v298 = vld [vmem:[#allocation6 + $0x70] sm:$0xff]
        %v299 = vld [vmem:[#allocation6 + $0x78] sm:$0xff]
        %300 = vmatprep.subr.mxu0 0.0
        %301 = vmatpush1.xpose.msra.mxu0 %v284
        %302 = vmatprep.subr.mxu0 0.0
        %303 = vmatpush1.xpose.msra.mxu0 %v285
        %304 = vmatprep.subr.mxu0 0.0
        %305 = vmatpush1.xpose.msra.mxu0 %v286
        %306 = vmatprep.subr.mxu0 0.0
        %307 = vmatpush1.xpose.msra.mxu0 %v287
        %308 = vmatprep.subr.mxu0 0.0
        %309 = vmatpush1.xpose.msra.mxu0 %v288
        %310 = vmatprep.subr.mxu0 0.0
        %311 = vmatpush1.xpose.msra.mxu0 %v289
        %312 = vmatprep.subr.mxu0 0.0
        %313 = vmatpush1.xpose.msra.mxu0 %v290
        %314 = vmatprep.subr.mxu0 0.0
        %315 = vmatpush1.xpose.msra.mxu0 %v291
        %316 = vmatprep.subr.mxu0 0.0
        %317 = vmatpush1.xpose.msra.mxu0 %v292
        %318 = vmatprep.subr.mxu0 0.0
        %319 = vmatpush1.xpose.msra.mxu0 %v293
        %320 = vmatprep.subr.mxu0 0.0
        %321 = vmatpush1.xpose.msra.mxu0 %v294
        %322 = vmatprep.subr.mxu0 0.0
        %323 = vmatpush1.xpose.msra.mxu0 %v295
        %324 = vmatprep.subr.mxu0 0.0
        %325 = vmatpush1.xpose.msra.mxu0 %v296
        %326 = vmatprep.subr.mxu0 0.0
        %327 = vmatpush1.xpose.msra.mxu0 %v297
        %328 = vmatprep.subr.mxu0 0.0
        %329 = vmatpush1.xpose.msra.mxu0 %v298
        %330 = vmatprep.subr.mxu0 0.0
        %331 = vmatpush1.xpose.msra.mxu0 %v299
        %332 = vmatprep.subr.mxu0 0.0
        %333 = vmatpush1.xpose.msra.mxu0 0.0
        %334 = vmatprep.subr.mxu0 0.0
        %335 = vmatpush1.xpose.msra.mxu0 0.0
        %336 = vmatprep.subr.mxu0 0.0
        %337 = vmatpush1.xpose.msra.mxu0 0.0
        %338 = vmatprep.subr.mxu0 0.0
        %339 = vmatpush1.xpose.msra.mxu0 0.0
        %340 = vmatprep.subr.mxu0 0.0
        %341 = vmatpush1.xpose.msra.mxu0 0.0
        %342 = vmatprep.subr.mxu0 0.0
        %343 = vmatpush1.xpose.msra.mxu0 0.0
        %344 = vmatprep.subr.mxu0 0.0
        %345 = vmatpush1.xpose.msra.mxu0 0.0
        %346 = vmatprep.subr.mxu0 0.0
        %347 = vmatpush1.xpose.msra.mxu0 0.0
        %348 = vmatprep.subr.mxu0 0.0
        %349 = vmatpush1.xpose.msra.mxu0 0.0
        %350 = vmatprep.subr.mxu0 0.0
        %351 = vmatpush1.xpose.msra.mxu0 0.0
        %352 = vmatprep.subr.mxu0 0.0
        %353 = vmatpush1.xpose.msra.mxu0 0.0
        %354 = vmatprep.subr.mxu0 0.0
        %355 = vmatpush1.xpose.msra.mxu0 0.0
        %356 = vmatprep.subr.mxu0 0.0
        %357 = vmatpush1.xpose.msra.mxu0 0.0
        %358 = vmatprep.subr.mxu0 0.0
        %359 = vmatpush1.xpose.msra.mxu0 0.0
        %360 = vmatprep.subr.mxu0 0.0
        %361 = vmatpush1.xpose.msra.mxu0 0.0
        %362 = vmatprep.subr.mxu0 0.0
        %363 = vmatpush1.xpose.msra.mxu0 0.0
        %364 = vmatprep.mubr.f32.mxu0 0.0
        %365 = vmatmul.mubr.f32.gmra.mrb[0].mxu0 %v283
        %v366 = vpop.f32.mrb[0].mxu0
        %v367 = vadd.f32 0.0, %v366
        %v368 = vpop.f32.mrb[0].mxu0
        %369 = vdwg.mxu0
        %v370 = vadd.f32 %v282, %v367
        %371 = vst [vmem:[#allocation2] sm:$0xff] %v370
        // Predicated region
        $region53: #{tpu_custom_call.1} parent=39 // pred_check
          %p372 = pneg %p277
        $region54: #{tpu_custom_call.1} parent=39 // pred_check_branch
          %374 = sbr.rel (%p372) target = $region56
        $region55: #{tpu_custom_call.1} parent=39 // pred_region
          %v375 = vld [vmem:[#allocation2] sm:$0xff]
          %v376 = vld [vmem:[%s2] sm:$0x1]
          %v378 = vlaneseq
          %v379 = vshrl.u32 %v378, 7
          %v380 = vsub.s32 0, %v379
          %v381 = vrot.slane %v376, %v380
          %v383 = vadd.f32 %v375, %v381
          %384 = vadd.xlane.f32.xlu0 %v383
          %v385 = vpop.xlane.xlu0 %384
          %v386 = vrcp.pop 128.0
          %v387 = vmul.f32 %v385, %v386
          %v388 = vmul.f32 %v383, %v383
          %389 = vadd.xlane.f32.xlu0 %v388
          %v390 = vpop.xlane.xlu0 %389
          %v391 = vmul.f32 %v390, %v386
          %v392 = vmul.f32 %v387, %v387
          %v393 = vsub.f32 %v391, %v392
          %v394 = vmax.f32 %v393, 0.0
          %v395 = vsub.f32 %v383, %v387
          %v396 = vadd.f32 %v394, 1e-05
          %v397 = vrsqrt.pop %v396
          %v398 = vmul.f32 %v395, %v397
          %v399 = vld [vmem:[%s3] sm:$0x1]
          %v401 = vlaneseq
          %v402 = vshrl.u32 %v401, 7
          %v403 = vsub.s32 0, %v402
          %v404 = vrot.slane %v399, %v403
          %v406 = vmul.f32 %v404, %v398
          %v407 = vld [vmem:[%s4] sm:$0x1]
          %v409 = vlaneseq
          %v410 = vshrl.u32 %v409, 7
          %v411 = vsub.s32 0, %v410
          %v412 = vrot.slane %v407, %v411
          %v414 = vadd.f32 %v406, %v412
          %v415 = vxor.u32 %v414, 2147483648
          %v416 = vmul.f32 %v415, 1.442695
          %v417 = vpow.pop %v416
          %v418 = vadd.f32 %v417, 1.0
          %v419 = vrcp.pop %v418
          %v420 = vmul.f32 1.0, %v419
          %421 = vst [vmem:[%s276] sm:$0xff] %v420
        $region56: #{tpu_custom_call.1} parent=39 // pred_fallthru
          _
        %s422 = sand.u32 %s160, 1
        %s423 = scalar_lea.sflag [#allocation5], %s422
        %s424 = sand.u32 %s160, 1
        %s425 = smul.addr %s424, 8
        %s426 = scalar_lea.vmem [#allocation8], %s425
        // Predicated region
        $region57: #{tpu_custom_call.1} parent=39 // pred_check
          %p427 = pneg %p170
        $region58: #{tpu_custom_call.1} parent=39 // pred_check_branch
          %429 = sbr.rel (%p427) target = $region60
        $region59: #{tpu_custom_call.1} parent=39 // pred_region
          %s431 = ssub.s32 128, 128
          %432 = vsyncadd %s423, %s431
          %s433 = smul.addr %s27, 128
          %s434 = scalar_lea.hbm %s5, %s433
          %s436 = sshll.u32 %s426, 4
          %s437 = int_to_ptr.vmem [resolvable:$true] %s436
          %439 = dma.vmem_to_hbm [thread:$0]  %s437, 128, %s434, %s423
        $region60: #{tpu_custom_call.1} parent=39 // pred_fallthru
          _
      $region40: #{tpu_custom_call.1} parent=5 // pred_fallthru
        _
      %p440 = scmp.le.s32.totalorder 2, %s18
      // Predicated region
      $region61: #{tpu_custom_call.1} parent=5 // pred_check
        %p441 = pneg %p440
      $region62: #{tpu_custom_call.1} parent=5 // pred_check_branch
        %443 = sbr.rel (%p441) target = $region64
      $region63: #{tpu_custom_call.1} parent=5 // pred_region
        %s444 = ssub.s32 %s18, 2
        // Predicated region
        $region65: #{tpu_custom_call.1} parent=63 // pred_check
          %p445 = pneg %p176
        $region66: #{tpu_custom_call.1} parent=63 // pred_check_branch
          %447 = sbr.rel (%p445) target = $region68
        $region67: #{tpu_custom_call.1} parent=63 // pred_region
          %s448 = sand.u32 %s161, 1
          %s449 = scalar_lea.sflag [#allocation5], %s448
          %s450 = sand.u32 %s161, 1
          %s451 = smul.addr %s450, 8
          %s452 = scalar_lea.vmem [#allocation8], %s451
          %453 = dma.done %s449, 128
        $region68: #{tpu_custom_call.1} parent=63 // pred_fallthru
          _
      $region64: #{tpu_custom_call.1} parent=5 // pred_fallthru
        _
    $region6: #{tpu_custom_call.1} parent=1 // loop_footer
      %s22 = sadd.s32 1, %s18
    $region7: #{tpu_custom_call.1} parent=1 // loop_footer_branch
      %17 = sbr.rel target = $region3
    $region8: #{tpu_custom_call.1} parent=1 // loop_exit
      _
    %454 = vsyncpa [#allocation4], 1
    %s455 = scalar_lea.sflag [#allocation4], 1
    %456 = vsyncpa %s455, 1
    %457 = vsyncpa [#allocation7], 1
    %458 = vsyncpa [#allocation5], 1
    %s459 = scalar_lea.sflag [#allocation5], 1
    %460 = vsyncpa %s459, 1

</llo_original>
